<compile_context>
chip_gen: v7x
topology: tpu7x:2x2x1
jax: 0.10.0
libtpu: 0.0.40
codegen_flags: <defaults>
</compile_context>

<pallas_src>
import functools
import math

import jax
import jax.numpy as jnp
from jax import lax
from jax.experimental import pallas as pl
from jax.experimental.pallas import tpu as pltpu


# ----------------------------------------------------------------------------
# tiling helpers
# ----------------------------------------------------------------------------
def _sub_mult(dtype):
    # sublane multiple for the second-to-last dim: f32 -> 8, bf16 -> 16, i8 -> 32
    return max(8, 32 // jnp.dtype(dtype).itemsize)


def _lane_pack_factor(d_out, n_rows):
    # how many rows of a narrow (d_out < 128) output pack into one 128-lane row
    if 0 < d_out < 128 and 128 % d_out == 0 and n_rows % (128 // d_out) == 0:
        return 128 // d_out
    return 1


def _choose_tile_and_pack(n_rows, d_in, d_out, in_dtype, out_dtype, *,
                          min_blocks=1,
                          target_bytes=1 << 20,      # ~1 MiB of input per step
                          vmem_budget=8 << 20):      # 2-deep in+out tile cap
    """Pick (row_tile, lane_pack).

    HBM-bound kernels: size the tile to move ~target_bytes of input per grid
    step (amortizes per-step overhead), cap so double-buffered in+out tiles
    stay well inside the scoped-VMEM default on every generation (v5e's
    16 MiB scoped is the tightest), and align so both the input block and the
    lane-packed output block are sublane-clean.
    """
    in_it = jnp.dtype(in_dtype).itemsize
    out_it = jnp.dtype(out_dtype).itemsize
    in_mult = _sub_mult(in_dtype)
    out_mult = _sub_mult(out_dtype)
    pack = _lane_pack_factor(d_out, n_rows)

    per_row = 2 * (d_in * in_it + d_out * out_it)    # 2-deep pipeline buffers
    tm = max(in_mult, target_bytes // max(d_in * in_it, 1))
    tm = min(tm, max(in_mult, vmem_budget // max(per_row, 1)))
    if min_blocks > 1:                               # expose >=2 blocks (megacore)
        tm = min(tm, max(in_mult, -(-n_rows // min_blocks)))

    if tm >= n_rows and min_blocks <= 1:
        # single block covering all rows: block dims == full dims, always legal
        return n_rows, pack

    # multi-block: keep every block (and its packed output block) sublane-aligned
    if pack == 1:
        align = in_mult
    else:
        po = out_mult * pack
        align = in_mult * po // math.gcd(in_mult, po)
    tm = max(align, (tm // align) * align)
    if tm >= n_rows:
        return n_rows, pack
    return tm, pack


def _ln_rows(x_f32, g, b, eps):
    """Row-wise LayerNorm in f32, two-pass variance (numerically stable)."""
    mean = jnp.mean(x_f32, axis=-1, keepdims=True)
    xc = x_f32 - mean
    var = jnp.mean(xc * xc, axis=-1, keepdims=True)
    return xc * lax.rsqrt(var + eps) * g + b


# ----------------------------------------------------------------------------
# Standalone LayerNorm kernel (generic PreNorm path, arbitrary fn)
# ----------------------------------------------------------------------------
def _layernorm_kernel(x_ref, g_ref, b_ref, o_ref, *, eps, pack):
    x = x_ref[...].astype(jnp.float32)                      # (TM, D)
    y = _ln_rows(x, g_ref[...], b_ref[...], eps)
    tm, d = y.shape
    # lane-dense store: (TM, D) -> (TM/pack, pack*D)
    o_ref[...] = y.reshape(tm // pack, pack * d).astype(o_ref.dtype)


def layernorm_pallas(x, gamma, beta, *, eps=1e-5):
    orig = x.shape
    d = orig[-1]
    x2 = x.reshape(-1, d)                     # free row-major reshape
    r = x2.shape[0]
    tm, pack = _choose_tile_and_pack(r, d, d, x.dtype, x.dtype, min_blocks=2)
    n_blocks = pl.cdiv(r, tm)

    g2 = gamma.reshape(1, d).astype(jnp.float32)
    b2 = beta.reshape(1, d).astype(jnp.float32)

    cost = pl.CostEstimate(
        flops=int(10 * r * d), transcendentals=int(r),
        bytes_accessed=int(2 * r * d * x.dtype.itemsize + 8 * d))

    out = pl.pallas_call(
        functools.partial(_layernorm_kernel, eps=eps, pack=pack),
        out_shape=jax.ShapeDtypeStruct((r // pack, pack * d), x.dtype),
        grid_spec=pltpu.PrefetchScalarGridSpec(
            num_scalar_prefetch=0,
            grid=(n_blocks,),
            in_specs=[
                pl.BlockSpec((tm, d), lambda i: (i, 0)),
                pl.BlockSpec((1, d), lambda i: (0, 0)),
                pl.BlockSpec((1, d), lambda i: (0, 0)),
            ],
            out_specs=pl.BlockSpec((tm // pack, pack * d), lambda i: (i, 0)),
        ),
        compiler_params=pltpu.CompilerParams(
            dimension_semantics=("parallel",)),
        cost_estimate=cost,
    )(x2, g2, b2)
    return out.reshape(orig)                  # free row-major reshape back


# ----------------------------------------------------------------------------
# Fused: LayerNorm(x) @ W + b   [+ per-batch context term]
# grid = (B, cdiv(N, TM)), both axes parallel
# ----------------------------------------------------------------------------
def _fused_ln_linear_kernel(x_ref, g_ref, b_ref, w_ref, bias_ref, o_ref, *,
                            eps, pack):
    x = x_ref[0].astype(jnp.float32)                        # (TM, D)
    y = _ln_rows(x, g_ref[...], b_ref[...], eps)
    acc = jnp.dot(y, w_ref[...].astype(jnp.float32),
                  preferred_element_type=jnp.float32)       # (TM, Dout)
    acc = acc + bias_ref[...]
    tm, dout = acc.shape
    o_ref[0] = acc.reshape(tm // pack, pack * dout).astype(o_ref.dtype)


def _fused_ln_linear_ctx_kernel(x_ref, g_ref, b_ref, w_ref, bias_ref,
                                cadd_ref, o_ref, *, eps, pack):
    x = x_ref[0].astype(jnp.float32)                        # (TM, D)
    y = _ln_rows(x, g_ref[...], b_ref[...], eps)
    acc = jnp.dot(y, w_ref[...].astype(jnp.float32),
                  preferred_element_type=jnp.float32)       # (TM, Dout)
    acc = acc + bias_ref[...] + cadd_ref[0]                 # (1, Dout) broadcast
    tm, dout = acc.shape
    o_ref[0] = acc.reshape(tm // pack, pack * dout).astype(o_ref.dtype)


def fused_ln_linear(x, gamma, beta, w, bias, ctx_add=None, *, eps=1e-5):
    """out = LayerNorm(x) @ w + bias (+ ctx_add broadcast over tokens)."""
    B, N, D = x.shape
    Dout = w.shape[1]
    min_blocks = 2 if B == 1 else 1           # keep both TCs busy when B == 1
    tm, pack = _choose_tile_and_pack(N, D, Dout, x.dtype, x.dtype,
                                     min_blocks=min_blocks)
    n_blocks = pl.cdiv(N, tm)

    g2 = gamma.reshape(1, D).astype(jnp.float32)
    b2 = beta.reshape(1, D).astype(jnp.float32)
    bias2 = bias.reshape(1, Dout).astype(jnp.float32)

    flops = 2 * B * N * D * Dout + 10 * B * N * D
    bytes_accessed = (B * N * (D + Dout)) * x.dtype.itemsize \
        + (D * Dout + 2 * D + Dout) * 4
    cost = pl.CostEstimate(flops=int(flops), transcendentals=int(B * N),
                           bytes_accessed=int(bytes_accessed))

    in_specs = [
        pl.BlockSpec((1, tm, D), lambda bi, ni: (bi, ni, 0)),
        pl.BlockSpec((1, D), lambda bi, ni: (0, 0)),
        pl.BlockSpec((1, D), lambda bi, ni: (0, 0)),
        pl.BlockSpec((D, Dout), lambda bi, ni: (0, 0)),
        pl.BlockSpec((1, Dout), lambda bi, ni: (0, 0)),
    ]
    args = [x, g2, b2, w, bias2]
    if ctx_add is not None:
        in_specs.append(pl.BlockSpec((1, 1, Dout), lambda bi, ni: (bi, 0, 0)))
        args.append(ctx_add)
        kernel = functools.partial(_fused_ln_linear_ctx_kernel, eps=eps,
                                   pack=pack)
    else:
        kernel = functools.partial(_fused_ln_linear_kernel, eps=eps, pack=pack)

    out = pl.pallas_call(
        kernel,
        out_shape=jax.ShapeDtypeStruct((B, N // pack, pack * Dout), x.dtype),
        grid_spec=pltpu.PrefetchScalarGridSpec(
            num_scalar_prefetch=0,
            grid=(B, n_blocks),
            in_specs=in_specs,
            out_specs=pl.BlockSpec((1, tm // pack, pack * Dout),
                                   lambda bi, ni: (bi, ni, 0)),
        ),
        compiler_params=pltpu.CompilerParams(
            dimension_semantics=("parallel", "parallel")),
        cost_estimate=cost,
    )(*args)
    return out.reshape(B, N, Dout)            # free row-major reshape back


# ----------------------------------------------------------------------------
# Fused: mean_over_M( LayerNorm(context) ) @ Wc + bc   -> (B, 1, Dout)
# The matmul is hoisted out of the reduction (mean(LN(c)) @ W == mean(LN(c)@W)),
# so the loop only accumulates a (1, Dc) sum; one tiny matmul in the finalize.
# grid = (B, cdiv(M, TM)), M axis is an "arbitrary" reduction
# ----------------------------------------------------------------------------
def _fused_ln_mean_linear_kernel(c_ref, g_ref, b_ref, w_ref, bias_ref, o_ref,
                                 acc_ref, *, eps, m_actual, tile_m, need_mask):
    mi = pl.program_id(1)

    @pl.when(mi == 0)
    def _():
        acc_ref[...] = jnp.zeros_like(acc_ref)

    c = c_ref[0].astype(jnp.float32)                        # (TM, Dc)
    y = _ln_rows(c, g_ref[...], b_ref[...], eps)
    if need_mask:
        # ragged final block: zero rows past the true sequence length
        row = mi * tile_m + lax.broadcasted_iota(jnp.int32, (tile_m, 1), 0)
        y = jnp.where(row < m_actual, y, 0.0)
    acc_ref[...] += jnp.sum(y, axis=0, keepdims=True)       # (1, Dc)

    @pl.when(mi == pl.num_programs(1) - 1)
    def _():
        mean_c = acc_ref[...] * (1.0 / m_actual)            # (1, Dc)
        proj = jnp.dot(mean_c, w_ref[...].astype(jnp.float32),
                       preferred_element_type=jnp.float32)  # (1, Dout)
        o_ref[0] = (proj + bias_ref[...]).astype(o_ref.dtype)


def fused_ln_linear_mean(context, gamma, beta, w, bias, *, eps=1e-5):
    B, M, Dc = context.shape
    Dout = w.shape[1]
    tm, _ = _choose_tile_and_pack(M, Dc, 0, context.dtype, jnp.float32)
    n_blocks = pl.cdiv(M, tm)
    need_mask = (M % tm) != 0

    g2 = gamma.reshape(1, Dc).astype(jnp.float32)
    b2 = beta.reshape(1, Dc).astype(jnp.float32)
    bias2 = bias.reshape(1, Dout).astype(jnp.float32)

    flops = 10 * B * M * Dc + 2 * B * Dc * Dout
    bytes_accessed = B * M * Dc * context.dtype.itemsize \
        + (Dc * Dout + 2 * Dc + Dout + B * Dout) * 4
    cost = pl.CostEstimate(flops=int(flops), transcendentals=int(B * M),
                           bytes_accessed=int(bytes_accessed))

    out = pl.pallas_call(
        functools.partial(_fused_ln_mean_linear_kernel, eps=eps, m_actual=M,
                          tile_m=tm, need_mask=need_mask),
        out_shape=jax.ShapeDtypeStruct((B, 1, Dout), jnp.float32),
        grid_spec=pltpu.PrefetchScalarGridSpec(
            num_scalar_prefetch=0,
            grid=(B, n_blocks),
            in_specs=[
                pl.BlockSpec((1, tm, Dc), lambda bi, mi: (bi, mi, 0)),
                pl.BlockSpec((1, Dc), lambda bi, mi: (0, 0)),
                pl.BlockSpec((1, Dc), lambda bi, mi: (0, 0)),
                pl.BlockSpec((Dc, Dout), lambda bi, mi: (0, 0)),
                pl.BlockSpec((1, Dout), lambda bi, mi: (0, 0)),
            ],
            out_specs=pl.BlockSpec((1, 1, Dout), lambda bi, mi: (bi, 0, 0)),
            scratch_shapes=[pltpu.VMEM((1, Dc), jnp.float32)],
        ),
        compiler_params=pltpu.CompilerParams(
            dimension_semantics=("parallel", "arbitrary")),
        cost_estimate=cost,
    )(context, g2, b2, w, bias2)
    return out                                              # (B, 1, Dout) f32


# ----------------------------------------------------------------------------
# A concrete `fn` for PreNorm to wrap: linear on x plus a context projection
# averaged over the context sequence.  Supports a fused path that also folds
# in the PreNorm LayerNorms.
# ----------------------------------------------------------------------------
class FusedLinearBlock:
    def __init__(self, key, dim, context_dim):
        k1, k2 = jax.random.split(key)
        self.w_x = jax.random.normal(k1, (dim, dim), jnp.float32) * 0.02
        self.b_x = jnp.zeros((dim,), jnp.float32)
        self.w_c = jax.random.normal(k2, (context_dim, dim), jnp.float32) * 0.02
        self.b_c = jnp.zeros((dim,), jnp.float32)

    # generic path: x/context already normalized by PreNorm
    def __call__(self, x, context=None):
        y = x @ self.w_x + self.b_x
        if context is not None:
            y = y + jnp.mean(context @ self.w_c + self.b_c, axis=1,
                             keepdims=True)
        return y

    # fused path: consumes the raw inputs plus the LayerNorm params
    def fused_call(self, x, g, b, context=None, ctx_g=None, ctx_b=None,
                   eps=1e-5):
        ctx_mean = None
        if context is not None:
            ctx_mean = fused_ln_linear_mean(context, ctx_g, ctx_b,
                                            self.w_c, self.b_c, eps=eps)
        return fused_ln_linear(x, g, b, self.w_x, self.b_x,
                               ctx_add=ctx_mean, eps=eps)


# ----------------------------------------------------------------------------
# PreNorm module (functional): norm(x), optionally norm(context), then fn.
# Uses the fully fused kernels when fn supports it.
# ----------------------------------------------------------------------------
class PreNormPallas:
    def __init__(self, dim, fn, context_dim=None, eps=1e-5):
        self.fn = fn
        self.eps = eps
        # nn.LayerNorm default init: weight = 1, bias = 0
        self.norm_g = jnp.ones((dim,), jnp.float32)
        self.norm_b = jnp.zeros((dim,), jnp.float32)
        if context_dim is not None:
            self.ctx_g = jnp.ones((context_dim,), jnp.float32)
            self.ctx_b = jnp.zeros((context_dim,), jnp.float32)
        else:
            self.ctx_g = None
            self.ctx_b = None

    def __call__(self, x, **kwargs):
        context = kwargs.get("context", None)
        if isinstance(self.fn, FusedLinearBlock):
            # fused fast path: LN folded into the projection kernels
            return self.fn.fused_call(x, self.norm_g, self.norm_b,
                                      context=context, ctx_g=self.ctx_g,
                                      ctx_b=self.ctx_b, eps=self.eps)
        # generic path: standalone LN kernels, then arbitrary fn
        x = layernorm_pallas(x, self.norm_g, self.norm_b, eps=self.eps)
        if self.ctx_g is not None and context is not None:
            normed_context = layernorm_pallas(context, self.ctx_g, self.ctx_b,
                                              eps=self.eps)
            kwargs = dict(kwargs, context=normed_context)
        return self.fn(x, **kwargs)


# ----------------------------------------------------------------------------
# Pure-JAX reference for a sanity check.
# ----------------------------------------------------------------------------
def _ln_ref(x, g, b, eps=1e-5):
    m = jnp.mean(x, axis=-1, keepdims=True)
    v = jnp.mean((x - m) ** 2, axis=-1, keepdims=True)
    return (x - m) / jnp.sqrt(v + eps) * g + b


if __name__ == "__main__":
    B, N, M = 2, 64, 40
    dim, context_dim = 32, 16

    key = jax.random.PRNGKey(0)
    kx, kc, kf = jax.random.split(key, 3)
    x = jax.random.normal(kx, (B, N, dim), jnp.float32)
    context = jax.random.normal(kc, (B, M, context_dim), jnp.float32)

    fn = FusedLinearBlock(kf, dim, context_dim)
    prenorm = PreNormPallas(dim, fn, context_dim=context_dim)

    out = jax.block_until_ready(prenorm(x, context=context))

    # reference check (fused path)
    xn_ref = _ln_ref(x, prenorm.norm_g, prenorm.norm_b)
    cn_ref = _ln_ref(context, prenorm.ctx_g, prenorm.ctx_b)
    ref = (xn_ref @ fn.w_x + fn.b_x) + jnp.mean(
        cn_ref @ fn.w_c + fn.b_c, axis=1, keepdims=True)
    assert out.shape == (B, N, dim)
    assert jnp.allclose(out, ref, atol=1e-4, rtol=1e-4), \
        float(jnp.max(jnp.abs(out - ref)))

    # also exercise the standalone LayerNorm kernel (generic PreNorm path,
    # multi-block grid + lane-packed output)
    ln_out = jax.block_until_ready(
        layernorm_pallas(x, prenorm.norm_g, prenorm.norm_b))
    assert jnp.allclose(ln_out, xn_ref, atol=1e-5, rtol=1e-5)

    print("KERNEL_OK")
</pallas_src>

<mosaic_0001>
module attributes {stable_mosaic.version = 11 : i64} {
  func.func @_fused_ln_mean_linear_kernel(%arg0: i32, %arg1: i32, %arg2: memref<1x40x16xf32, #tpu.memory_space<vmem>>, %arg3: memref<1x16xf32, #tpu.memory_space<vmem>>, %arg4: memref<1x16xf32, #tpu.memory_space<vmem>>, %arg5: memref<16x32xf32, #tpu.memory_space<vmem>>, %arg6: memref<1x32xf32, #tpu.memory_space<vmem>>, %arg7: memref<1x1x32xf32, #tpu.memory_space<vmem>>, %arg8: memref<1x16xf32, #tpu.memory_space<vmem>>) attributes {dimension_semantics = [#tpu.dimension_semantics<parallel>, #tpu.dimension_semantics<arbitrary>], iteration_bounds = array<i64: 2, 1>, scalar_prefetch = 0 : i64, scratch_operands = 1 : i64, tpu.core_type = #tpu.core_type<tc>, window_params = [{transform_indices = @transform_0, window_bounds = array<i64: 1, 40, 16>}, {pipeline_mode = #tpu.pipeline_mode<synchronous>, transform_indices = @transform_1, window_bounds = array<i64: 1, 16>}, {pipeline_mode = #tpu.pipeline_mode<synchronous>, transform_indices = @transform_2, window_bounds = array<i64: 1, 16>}, {pipeline_mode = #tpu.pipeline_mode<synchronous>, transform_indices = @transform_3, window_bounds = array<i64: 16, 32>}, {pipeline_mode = #tpu.pipeline_mode<synchronous>, transform_indices = @transform_4, window_bounds = array<i64: 1, 32>}, {transform_indices = @transform_5, window_bounds = array<i64: 1, 1, 32>}]} {
    %c0_i32 = arith.constant 0 : i32
    %0 = arith.cmpi eq, %arg1, %c0_i32 : i32
    %1 = arith.extui %0 : i1 to i32
    %c0_i32_0 = arith.constant 0 : i32
    %2 = arith.cmpi ne, %1, %c0_i32_0 : i32
    scf.if %2 {
      %cst_18 = arith.constant 0.000000e+00 : f32
      %35 = vector.broadcast %cst_18 : f32 to vector<1x16xf32>
      %c0_19 = arith.constant 0 : index
      %c0_20 = arith.constant 0 : index
      %36 = vector.load %arg8[%c0_19, %c0_20] : memref<1x16xf32, #tpu.memory_space<vmem>>, vector<1x16xf32>
      tpu.vector_store %arg8[%c0_19, %c0_20], %35 {strides = array<i32>} : memref<1x16xf32, #tpu.memory_space<vmem>>, vector<1x16xf32>,
    } else {
    }
    %c0 = arith.constant 0 : index
    %c0_1 = arith.constant 0 : index
    %c0_2 = arith.constant 0 : index
    %3 = vector.load %arg2[%c0, %c0_1, %c0_2] : memref<1x40x16xf32, #tpu.memory_space<vmem>>, vector<1x40x16xf32>
    %4 = vector.shape_cast %3 : vector<1x40x16xf32> to vector<40x16xf32>
    %c0_3 = arith.constant 0 : index
    %c0_4 = arith.constant 0 : index
    %5 = vector.load %arg3[%c0_3, %c0_4] : memref<1x16xf32, #tpu.memory_space<vmem>>, vector<1x16xf32>
    %c0_5 = arith.constant 0 : index
    %c0_6 = arith.constant 0 : index
    %6 = vector.load %arg4[%c0_5, %c0_6] : memref<1x16xf32, #tpu.memory_space<vmem>>, vector<1x16xf32>
    %cst = arith.constant dense<0.000000e+00> : vector<40xf32>
    %7 = vector.multi_reduction <add>, %4, %cst [1] : vector<40x16xf32> to vector<40xf32>
    %8 = vector.shape_cast %7 : vector<40xf32> to vector<40x1xf32>
    %cst_7 = arith.constant 1.600000e+01 : f32
    %9 = vector.broadcast %cst_7 : f32 to vector<40x1xf32>
    %10 = arith.divf %8, %9 : vector<40x1xf32>
    %11 = vector.broadcast %10 : vector<40x1xf32> to vector<40x16xf32>
    %12 = arith.subf %4, %11 : vector<40x16xf32>
    %13 = arith.mulf %12, %12 : vector<40x16xf32>
    %cst_8 = arith.constant dense<0.000000e+00> : vector<40xf32>
    %14 = vector.multi_reduction <add>, %13, %cst_8 [1] : vector<40x16xf32> to vector<40xf32>
    %15 = vector.shape_cast %14 : vector<40xf32> to vector<40x1xf32>
    %cst_9 = arith.constant 1.600000e+01 : f32
    %16 = vector.broadcast %cst_9 : f32 to vector<40x1xf32>
    %17 = arith.divf %15, %16 : vector<40x1xf32>
    %cst_10 = arith.constant 9.99999974E-6 : f32
    %18 = vector.broadcast %cst_10 : f32 to vector<40x1xf32>
    %19 = arith.addf %17, %18 : vector<40x1xf32>
    %20 = math.rsqrt %19 : vector<40x1xf32>
    %21 = vector.broadcast %20 : vector<40x1xf32> to vector<40x16xf32>
    %22 = arith.mulf %12, %21 : vector<40x16xf32>
    %23 = vector.broadcast %5 : vector<1x16xf32> to vector<40x16xf32>
    %24 = arith.mulf %22, %23 : vector<40x16xf32>
    %25 = vector.broadcast %6 : vector<1x16xf32> to vector<40x16xf32>
    %26 = arith.addf %24, %25 : vector<40x16xf32>
    %c0_11 = arith.constant 0 : index
    %c0_12 = arith.constant 0 : index
    %27 = vector.load %arg8[%c0_11, %c0_12] : memref<1x16xf32, #tpu.memory_space<vmem>>, vector<1x16xf32>
    %cst_13 = arith.constant dense<0.000000e+00> : vector<16xf32>
    %28 = vector.multi_reduction <add>, %26, %cst_13 [0] : vector<40x16xf32> to vector<16xf32>
    %29 = vector.shape_cast %28 : vector<16xf32> to vector<1x16xf32>
    %30 = arith.addf %27, %29 : vector<1x16xf32>
    %c0_14 = arith.constant 0 : index
    %c0_15 = arith.constant 0 : index
    %31 = vector.load %arg8[%c0_14, %c0_15] : memref<1x16xf32, #tpu.memory_space<vmem>>, vector<1x16xf32>
    tpu.vector_store %arg8[%c0_14, %c0_15], %30 {strides = array<i32>} : memref<1x16xf32, #tpu.memory_space<vmem>>, vector<1x16xf32>,
    %c0_i32_16 = arith.constant 0 : i32
    %32 = arith.cmpi eq, %arg1, %c0_i32_16 : i32
    %33 = arith.extui %32 : i1 to i32
    %c0_i32_17 = arith.constant 0 : i32
    %34 = arith.cmpi ne, %33, %c0_i32_17 : i32
    scf.if %34 {
      %c0_18 = arith.constant 0 : index
      %c0_19 = arith.constant 0 : index
      %35 = vector.load %arg8[%c0_18, %c0_19] : memref<1x16xf32, #tpu.memory_space<vmem>>, vector<1x16xf32>
      %cst_20 = arith.constant 2.500000e-02 : f32
      %36 = vector.broadcast %cst_20 : f32 to vector<1x16xf32>
      %37 = arith.mulf %35, %36 : vector<1x16xf32>
      %c0_21 = arith.constant 0 : index
      %c0_22 = arith.constant 0 : index
      %38 = vector.load %arg5[%c0_21, %c0_22] : memref<16x32xf32, #tpu.memory_space<vmem>>, vector<16x32xf32>
      %cst_23 = arith.constant dense<0.000000e+00> : vector<1x32xf32>
      %39 = tpu.matmul %37, %38, %cst_23 {dimension_numbers = #tpu.dot_dimension_numbers<[1], [0], [0], [1], [0, 0, 1, 1], [], []>} : vector<1x16xf32>, vector<16x32xf32>, vector<1x32xf32> -> vector<1x32xf32>
      %c0_24 = arith.constant 0 : index
      %c0_25 = arith.constant 0 : index
      %40 = vector.load %arg6[%c0_24, %c0_25] : memref<1x32xf32, #tpu.memory_space<vmem>>, vector<1x32xf32>
      %41 = arith.addf %39, %40 : vector<1x32xf32>
      %c0_26 = arith.constant 0 : index
      %c0_27 = arith.constant 0 : index
      %c0_28 = arith.constant 0 : index
      %42 = vector.load %arg7[%c0_26, %c0_27, %c0_28] : memref<1x1x32xf32, #tpu.memory_space<vmem>>, vector<1x1x32xf32>
      %43 = vector.shape_cast %42 : vector<1x1x32xf32> to vector<1x32xf32>
      %44 = vector.shape_cast %41 : vector<1x32xf32> to vector<1x1x32xf32>
      tpu.vector_store %arg7[%c0_26, %c0_27, %c0_28], %44 {strides = array<i32>} : memref<1x1x32xf32, #tpu.memory_space<vmem>>, vector<1x1x32xf32>,
    } else {
    }
    return
  }
  func.func @transform_0(%arg0: i32, %arg1: i32) -> (i32, i32, i32) {
    %c0_i32 = arith.constant 0 : i32
    %c0_i32_0 = arith.constant 0 : i32
    return %arg0, %arg1, %c0_i32 : i32, i32, i32
  }
  func.func @transform_1(%arg0: i32, %arg1: i32) -> (i32, i32) {
    %c0_i32 = arith.constant 0 : i32
    %c0_i32_0 = arith.constant 0 : i32
    %c0_i32_1 = arith.constant 0 : i32
    return %c0_i32, %c0_i32_0 : i32, i32
  }
  func.func @transform_2(%arg0: i32, %arg1: i32) -> (i32, i32) {
    %c0_i32 = arith.constant 0 : i32
    %c0_i32_0 = arith.constant 0 : i32
    %c0_i32_1 = arith.constant 0 : i32
    return %c0_i32, %c0_i32_0 : i32, i32
  }
  func.func @transform_3(%arg0: i32, %arg1: i32) -> (i32, i32) {
    %c0_i32 = arith.constant 0 : i32
    %c0_i32_0 = arith.constant 0 : i32
    %c0_i32_1 = arith.constant 0 : i32
    return %c0_i32, %c0_i32_0 : i32, i32
  }
  func.func @transform_4(%arg0: i32, %arg1: i32) -> (i32, i32) {
    %c0_i32 = arith.constant 0 : i32
    %c0_i32_0 = arith.constant 0 : i32
    %c0_i32_1 = arith.constant 0 : i32
    return %c0_i32, %c0_i32_0 : i32, i32
  }
  func.func @transform_5(%arg0: i32, %arg1: i32) -> (i32, i32, i32) {
    %c0_i32 = arith.constant 0 : i32
    %c0_i32_0 = arith.constant 0 : i32
    %c0_i32_1 = arith.constant 0 : i32
    return %arg0, %c0_i32, %c0_i32_0 : i32, i32, i32
  }
}

</mosaic_0001>

<llo_original>
// kernel: tpu_custom_call.1
$region0: #{tpu_custom_call.1}
  #allocation0 [shape = 'u32[]', space=smem, size = 0x4, offset = 0x4, fixed_abs, tag = 'smem constant byte address 0x4 - core index']
  #allocation1 [shape = 'u32[144,128]{1,0:T(1,128)}', space=vmem, size = 0x12000, scoped, tag = 'internal scratch']
  #allocation2 [shape = 'f32[1,16]{1,0:T(1,128)}', space=vmem, size = 0x200, scoped, tag = 'scratch operand']
  %s0 = inlined_call_operand.vmem [shape: f32[2,40,16], index: 0, kind: input, shape index: {}]
  %s1 = inlined_call_operand.vmem [shape: f32[1,16], index: 1, kind: input, shape index: {}]
  %s2 = inlined_call_operand.vmem [shape: f32[1,16], index: 2, kind: input, shape index: {}]
  %s3 = inlined_call_operand.vmem [shape: f32[16,32], index: 3, kind: input, shape index: {}]
  %s4 = inlined_call_operand.vmem [shape: f32[1,32], index: 4, kind: input, shape index: {}]
  %s5 = inlined_call_operand.hbm [shape: f32[2,1,32], index: 5, kind: output, shape index: {}]
  %s6 = sld [smem:[#allocation0]]
  $region61: #{tpu_custom_call.1} parent=0
    _
  %s8 = ssub.s32 1, %s6
  %s9 = scalar_select 0, %s8, %s6
  $region1: #{tpu_custom_call.1} parent=0
    #allocation3 [shape = 'u8[1024]{0}', space=vmem, size = 0x400, scoped, tag = 'output window, operand 0']
    #allocation4 [shape = 's32[2]{0}', space=sflag, size = 0x8, scoped, tag = 'scoped memory for tpu_custom_call.1']
    %10 = vsyncpa [#allocation4], 0
    %s11 = scalar_lea.sflag [#allocation4], 1
    %12 = vsyncpa %s11, 0
    loop: start=0, step=1, limit=4
    $region2: #{tpu_custom_call.1} parent=1 // loop_pre_header
      _
    $region3: #{tpu_custom_call.1} parent=1 // loop_header
      %s14 = sphi 0, %s18
      %p15 = scmp.ge.s32.totalorder %s14, 4
      %s21 = sphi 0, %s33
      %s22 = sphi 0, %s29
      %s23 = sphi 0, %s21
      %s24 = sphi 0, %s22
      %s25 = sphi 0, %s23
      %s26 = sphi 0, %s24
      %s38 = sphi 0, %s40
      %s41 = sphi 0, %s38
      %s42 = sphi 0, %s41
      %s58 = sphi 0, %s42
      %s62 = sphi 0, %s62
      %s64 = sphi 0, %s62
      %s65 = sphi 0, %s64
      %s79 = sphi 0, %s65
      %s83 = sphi 0, %s83
      %s85 = sphi 0, %s83
      %s86 = sphi 0, %s85
      %s100 = sphi 0, %s86
      %s104 = sphi 0, %s104
      %s106 = sphi 0, %s104
      %s107 = sphi 0, %s106
      %s121 = sphi 0, %s107
      %s125 = sphi 0, %s125
      %s127 = sphi 0, %s125
      %s128 = sphi 0, %s127
      %s142 = sphi 0, %s128
      %s148 = sphi 0, %s150
      %s151 = sphi 0, %s148
      %s152 = sphi 0, %s151
      %s168 = sphi 0, %s152
    $region4: #{tpu_custom_call.1} parent=1 // loop_header_branch
      %17 = sbr.rel (%p15) target = $region8
    $region5: #{tpu_custom_call.1} parent=1 // loop_body
      %s19 = ssub.s32 %s14, 1
      %s20 = ssub.s32 %s14, 2
      %s27 = sadd.s32 1, %s22
      %p28 = scmp.ge.s32.totalorder %s27, 1
      %s29 = scalar_select %p28, 0, %s27
      %s30 = sadd.s32 1, %s21
      %s31 = scalar_select %p28, %s30, %s21
      %p32 = scmp.ge.s32.totalorder %s31, 2
      %s33 = scalar_select %p32, 0, %s31
      %s34 = ssub.s32 %s21, %s33
      %s35 = ssub.s32 %s22, %s29
      %s36 = sor.u32 %s34, %s35
      %p37 = scmp.eq.s32.totalorder %s36, 0
      %s39 = sadd.s32 %s38, 1
      %s40 = scalar_select %p37, %s38, %s39
      %p43 = pneg %p37
      %p44 = scmp.eq.s32.totalorder %s14, 1
      %p45 = por %p43, %p44
      %p46 = scmp.ne.s32.totalorder %s38, %s41
      %p47 = scmp.eq.s32.totalorder %s14, 0
      %p48 = por %p46, %p47
      %p49 = scmp.ne.s32.totalorder %s38, %s41
      %p50 = scmp.eq.s32.totalorder %s19, 1
      %p51 = por %p49, %p50
      %p52 = scmp.ne.s32.totalorder %s41, %s42
      %p53 = scmp.eq.s32.totalorder %s19, 0
      %p54 = por %p52, %p53
      %p55 = scmp.ne.s32.totalorder %s41, %s42
      %p56 = scmp.eq.s32.totalorder %s20, 1
      %p57 = por %p55, %p56
      %p59 = scmp.ne.s32.totalorder %s42, %s58
      %p60 = scmp.eq.s32.totalorder %s20, 0
      %p61 = por %p59, %p60
      %s63 = sadd.s32 %s62, 1
      %p66 = scmp.eq.s32.totalorder %s14, 1
      %p67 = scmp.ne.s32.totalorder %s62, %s64
      %p68 = scmp.eq.s32.totalorder %s14, 0
      %p69 = por %p67, %p68
      %p70 = scmp.ne.s32.totalorder %s62, %s64
      %p71 = scmp.eq.s32.totalorder %s19, 1
      %p72 = por %p70, %p71
      %p73 = scmp.ne.s32.totalorder %s64, %s65
      %p74 = scmp.eq.s32.totalorder %s19, 0
      %p75 = por %p73, %p74
      %p76 = scmp.ne.s32.totalorder %s64, %s65
      %p77 = scmp.eq.s32.totalorder %s20, 1
      %p78 = por %p76, %p77
      %p80 = scmp.ne.s32.totalorder %s65, %s79
      %p81 = scmp.eq.s32.totalorder %s20, 0
      %p82 = por %p80, %p81
      %s84 = sadd.s32 %s83, 1
      %p87 = scmp.eq.s32.totalorder %s14, 1
      %p88 = scmp.ne.s32.totalorder %s83, %s85
      %p89 = scmp.eq.s32.totalorder %s14, 0
      %p90 = por %p88, %p89
      %p91 = scmp.ne.s32.totalorder %s83, %s85
      %p92 = scmp.eq.s32.totalorder %s19, 1
      %p93 = por %p91, %p92
      %p94 = scmp.ne.s32.totalorder %s85, %s86
      %p95 = scmp.eq.s32.totalorder %s19, 0
      %p96 = por %p94, %p95
      %p97 = scmp.ne.s32.totalorder %s85, %s86
      %p98 = scmp.eq.s32.totalorder %s20, 1
      %p99 = por %p97, %p98
      %p101 = scmp.ne.s32.totalorder %s86, %s100
      %p102 = scmp.eq.s32.totalorder %s20, 0
      %p103 = por %p101, %p102
      %s105 = sadd.s32 %s104, 1
      %p108 = scmp.eq.s32.totalorder %s14, 1
      %p109 = scmp.ne.s32.totalorder %s104, %s106
      %p110 = scmp.eq.s32.totalorder %s14, 0
      %p111 = por %p109, %p110
      %p112 = scmp.ne.s32.totalorder %s104, %s106
      %p113 = scmp.eq.s32.totalorder %s19, 1
      %p114 = por %p112, %p113
      %p115 = scmp.ne.s32.totalorder %s106, %s107
      %p116 = scmp.eq.s32.totalorder %s19, 0
      %p117 = por %p115, %p116
      %p118 = scmp.ne.s32.totalorder %s106, %s107
      %p119 = scmp.eq.s32.totalorder %s20, 1
      %p120 = por %p118, %p119
      %p122 = scmp.ne.s32.totalorder %s107, %s121
      %p123 = scmp.eq.s32.totalorder %s20, 0
      %p124 = por %p122, %p123
      %s126 = sadd.s32 %s125, 1
      %p129 = scmp.eq.s32.totalorder %s14, 1
      %p130 = scmp.ne.s32.totalorder %s125, %s127
      %p131 = scmp.eq.s32.totalorder %s14, 0
      %p132 = por %p130, %p131
      %p133 = scmp.ne.s32.totalorder %s125, %s127
      %p134 = scmp.eq.s32.totalorder %s19, 1
      %p135 = por %p133, %p134
      %p136 = scmp.ne.s32.totalorder %s127, %s128
      %p137 = scmp.eq.s32.totalorder %s19, 0
      %p138 = por %p136, %p137
      %p139 = scmp.ne.s32.totalorder %s127, %s128
      %p140 = scmp.eq.s32.totalorder %s20, 1
      %p141 = por %p139, %p140
      %p143 = scmp.ne.s32.totalorder %s128, %s142
      %p144 = scmp.eq.s32.totalorder %s20, 0
      %p145 = por %p143, %p144
      %s146 = ssub.s32 %s21, %s33
      %p147 = scmp.eq.s32.totalorder %s146, 0
      %s149 = sadd.s32 %s148, 1
      %s150 = scalar_select %p147, %s148, %s149
      %p153 = pneg %p147
      %p154 = scmp.eq.s32.totalorder %s14, 1
      %p155 = por %p153, %p154
      %p156 = scmp.ne.s32.totalorder %s148, %s151
      %p157 = scmp.eq.s32.totalorder %s14, 0
      %p158 = por %p156, %p157
      %p159 = scmp.ne.s32.totalorder %s148, %s151
      %p160 = scmp.eq.s32.totalorder %s19, 1
      %p161 = por %p159, %p160
      %p162 = scmp.ne.s32.totalorder %s151, %s152
      %p163 = scmp.eq.s32.totalorder %s19, 0
      %p164 = por %p162, %p163
      %p165 = scmp.ne.s32.totalorder %s151, %s152
      %p166 = scmp.eq.s32.totalorder %s20, 1
      %p167 = por %p165, %p166
      %p169 = scmp.ne.s32.totalorder %s152, %s168
      %p170 = scmp.eq.s32.totalorder %s20, 0
      %p171 = por %p169, %p170
      %p172 = scmp.le.s32.totalorder 1, %s14
      %p173 = scmp.lt.s32.totalorder %s14, 3
      %p174 = pnand %p172, %p173
      %p175 = pneg %p174
      // Predicated region
      $region9: #{tpu_custom_call.1} parent=5 // pred_check
        _
      $region10: #{tpu_custom_call.1} parent=5 // pred_check_branch
        %177 = sbr.rel (%p174) target = $region12
      $region11: #{tpu_custom_call.1} parent=5 // pred_region
        %s178 = ssub.s32 %s14, 1
        // Predicated region
        $region13: #{tpu_custom_call.1} parent=11 // pred_check
          %p179 = pneg %p75
        $region14: #{tpu_custom_call.1} parent=11 // pred_check_branch
          %181 = sbr.rel (%p179) target = $region16
        $region15: #{tpu_custom_call.1} parent=11 // pred_region
          _
        $region16: #{tpu_custom_call.1} parent=11 // pred_fallthru
          _
        // Predicated region
        $region17: #{tpu_custom_call.1} parent=11 // pred_check
          %p182 = pneg %p96
        $region18: #{tpu_custom_call.1} parent=11 // pred_check_branch
          %184 = sbr.rel (%p182) target = $region20
        $region19: #{tpu_custom_call.1} parent=11 // pred_region
          _
        $region20: #{tpu_custom_call.1} parent=11 // pred_fallthru
          _
        // Predicated region
        $region21: #{tpu_custom_call.1} parent=11 // pred_check
          %p185 = pneg %p117
        $region22: #{tpu_custom_call.1} parent=11 // pred_check_branch
          %187 = sbr.rel (%p185) target = $region24
        $region23: #{tpu_custom_call.1} parent=11 // pred_region
          _
        $region24: #{tpu_custom_call.1} parent=11 // pred_fallthru
          _
        // Predicated region
        $region25: #{tpu_custom_call.1} parent=11 // pred_check
          %p188 = pneg %p138
        $region26: #{tpu_custom_call.1} parent=11 // pred_check_branch
          %190 = sbr.rel (%p188) target = $region28
        $region27: #{tpu_custom_call.1} parent=11 // pred_region
          _
        $region28: #{tpu_custom_call.1} parent=11 // pred_fallthru
          _
      $region12: #{tpu_custom_call.1} parent=5 // pred_fallthru
        _
      %p191 = scmp.lt.s32.totalorder %s14, 2
      // Predicated region
      $region29: #{tpu_custom_call.1} parent=5 // pred_check
        %p192 = pneg %p191
      $region30: #{tpu_custom_call.1} parent=5 // pred_check_branch
        %194 = sbr.rel (%p192) target = $region32
      $region31: #{tpu_custom_call.1} parent=5 // pred_region
        // Predicated region
        $region33: #{tpu_custom_call.1} parent=31 // pred_check
          %p195 = pneg %p48
        $region34: #{tpu_custom_call.1} parent=31 // pred_check_branch
          %197 = sbr.rel (%p195) target = $region36
        $region35: #{tpu_custom_call.1} parent=31 // pred_region
          %s198 = smul.u32 5, %s22
          %p199 = scmp.lt.s32.totalorder %s21, 1
          %s200 = scalar_select %p199, %s21, 1
          %p201 = scmp.lt.s32.totalorder %s198, 4
          %s202 = scalar_select %p201, %s198, 4
          %s203 = smul.addr %s200, 5
          %s204 = sadd.s32 %s202, %s203
          %s205 = smul.addr %s204, 8
          %s206 = scalar_lea.vmem %s0, %s205
          %s207 = smul.u32 5, %s22
        $region36: #{tpu_custom_call.1} parent=31 // pred_fallthru
          _
      $region32: #{tpu_custom_call.1} parent=5 // pred_fallthru
        _
      %p208 = scmp.le.s32.totalorder 1, %s14
      %p209 = scmp.lt.s32.totalorder %s14, 3
      %p210 = pnand %p208, %p209
      %p211 = pneg %p210
      // Predicated region
      $region37: #{tpu_custom_call.1} parent=5 // pred_check
        _
      $region38: #{tpu_custom_call.1} parent=5 // pred_check_branch
        %213 = sbr.rel (%p210) target = $region40
      $region39: #{tpu_custom_call.1} parent=5 // pred_region
        %s214 = ssub.s32 %s14, 1
        %s215 = smul.u32 5, %s24
        %p216 = scmp.lt.s32.totalorder %s23, 1
        %s217 = scalar_select %p216, %s23, 1
        %p218 = scmp.lt.s32.totalorder %s215, 4
        %s219 = scalar_select %p218, %s215, 4
        %s220 = smul.addr %s217, 5
        %s221 = sadd.s32 %s219, %s220
        %s222 = smul.addr %s221, 8
        %s223 = scalar_lea.vmem %s0, %s222
        %p224 = pneg %p54
        %p225 = pneg %p51
        %p226 = pneg %p75
        %p227 = pneg %p72
        %p228 = pneg %p96
        %p229 = pneg %p93
        %p230 = pneg %p117
        %p231 = pneg %p114
        %p232 = pneg %p138
        %p233 = pneg %p135
        %p234 = pneg %p164
        %p235 = pneg %p161
        %s236 = sand.u32 %s151, 1
        %s237 = scalar_lea.sflag [#allocation4], %s236
        %s238 = sand.u32 %s151, 1
        %s239 = scalar_lea.vmem [#allocation3], %s238
        %s240 = smul.u32 5, %s24
        %p241 = scmp.lt.s32.totalorder %s23, 1
        %s242 = scalar_select %p241, %s23, 1
        %p243 = scmp.lt.s32.totalorder %s240, 4
        %s244 = scalar_select %p243, %s240, 4
        %s245 = smul.addr %s242, 5
        %s246 = sadd.s32 %s244, %s245
        %s247 = smul.addr %s246, 8
        %s248 = scalar_lea.vmem %s0, %s247
        %s249 = smul.u32 5, %s24
        %p250 = scmp.eq.s32.totalorder %s24, 0
        // Predicated region
        $region41: #{tpu_custom_call.1} parent=39 // pred_check
          %p251 = pneg %p250
        $region42: #{tpu_custom_call.1} parent=39 // pred_check_branch
          %253 = sbr.rel (%p251) target = $region44
        $region43: #{tpu_custom_call.1} parent=39 // pred_region
          %vm254 = vcmask 122880
          %255 = vst.msk [vmem:[#allocation2] sm:$0x1] %vm254, 0.0
        $region44: #{tpu_custom_call.1} parent=39 // pred_fallthru
          _
        %v256 = vld [vmem:[%s248] sm:$0xff]
        %v257 = vld [vmem:[%s248 + $0x8] sm:$0xff]
        %v258 = vld [vmem:[%s248 + $0x10] sm:$0xff]
        %v259 = vld [vmem:[%s248 + $0x18] sm:$0xff]
        %v260 = vld [vmem:[%s248 + $0x20] sm:$0xff]
        %v261 = vld [vmem:[%s1] sm:$0x1]
        %v262 = vld [vmem:[%s2] sm:$0x1]
        %vm263 = vcmask 130048
        %v264 = vsel %vm263, %v256, 0.0
        %265 = vadd.xlane.f32.xlu0 %v264
        %v266 = vpop.xlane.xlu0 %265
        %v267 = vsel %vm263, %v257, 0.0
        %268 = vadd.xlane.f32.xlu0 %v267
        %v269 = vpop.xlane.xlu0 %268
        %v270 = vsel %vm263, %v258, 0.0
        %271 = vadd.xlane.f32.xlu0 %v270
        %v272 = vpop.xlane.xlu0 %271
        %v273 = vsel %vm263, %v259, 0.0
        %274 = vadd.xlane.f32.xlu0 %v273
        %v275 = vpop.xlane.xlu0 %274
        %v276 = vsel %vm263, %v260, 0.0
        %277 = vadd.xlane.f32.xlu0 %v276
        %v278 = vpop.xlane.xlu0 %277
        %v279 = vrcp.pop 16.0
        %v280 = vmul.f32 %v266, %v279
        %v281 = vmul.f32 %v269, %v279
        %v282 = vmul.f32 %v272, %v279
        %v283 = vmul.f32 %v275, %v279
        %v284 = vmul.f32 %v278, %v279
        %v285 = vsub.f32 %v256, %v280
        %v286 = vsub.f32 %v257, %v281
        %v287 = vsub.f32 %v258, %v282
        %v288 = vsub.f32 %v259, %v283
        %v289 = vsub.f32 %v260, %v284
        %v290 = vmul.f32 %v285, %v285
        %v291 = vmul.f32 %v286, %v286
        %v292 = vmul.f32 %v287, %v287
        %v293 = vmul.f32 %v288, %v288
        %v294 = vmul.f32 %v289, %v289
        %v295 = vsel %vm263, %v290, 0.0
        %296 = vadd.xlane.f32.xlu0 %v295
        %v297 = vpop.xlane.xlu0 %296
        %v298 = vsel %vm263, %v291, 0.0
        %299 = vadd.xlane.f32.xlu0 %v298
        %v300 = vpop.xlane.xlu0 %299
        %v301 = vsel %vm263, %v292, 0.0
        %302 = vadd.xlane.f32.xlu0 %v301
        %v303 = vpop.xlane.xlu0 %302
        %v304 = vsel %vm263, %v293, 0.0
        %305 = vadd.xlane.f32.xlu0 %v304
        %v306 = vpop.xlane.xlu0 %305
        %v307 = vsel %vm263, %v294, 0.0
        %308 = vadd.xlane.f32.xlu0 %v307
        %v309 = vpop.xlane.xlu0 %308
        %v310 = vmul.f32 %v297, %v279
        %v311 = vmul.f32 %v300, %v279
        %v312 = vmul.f32 %v303, %v279
        %v313 = vmul.f32 %v306, %v279
        %v314 = vmul.f32 %v309, %v279
        %v315 = vadd.f32 %v310, 1e-05
        %v316 = vadd.f32 %v311, 1e-05
        %v317 = vadd.f32 %v312, 1e-05
        %v318 = vadd.f32 %v313, 1e-05
        %v319 = vadd.f32 %v314, 1e-05
        %v320 = vrsqrt.pop %v315
        %v321 = vrsqrt.pop %v316
        %v322 = vrsqrt.pop %v317
        %v323 = vrsqrt.pop %v318
        %v324 = vrsqrt.pop %v319
        %v325 = vmul.f32 %v285, %v320
        %v326 = vmul.f32 %v286, %v321
        %v327 = vmul.f32 %v287, %v322
        %v328 = vmul.f32 %v288, %v323
        %v329 = vmul.f32 %v289, %v324
        %v331 = vlaneseq
        %v332 = vshrl.u32 %v331, 7
        %v333 = vsub.s32 0, %v332
        %v334 = vrot.slane %v261, %v333
        %v336 = vmul.f32 %v325, %v334
        %v337 = vmul.f32 %v326, %v334
        %v338 = vmul.f32 %v327, %v334
        %v339 = vmul.f32 %v328, %v334
        %v340 = vmul.f32 %v329, %v334
        %v342 = vlaneseq
        %v343 = vshrl.u32 %v342, 7
        %v344 = vsub.s32 0, %v343
        %v345 = vrot.slane %v262, %v344
        %v347 = vadd.f32 %v336, %v345
        %v348 = vadd.f32 %v337, %v345
        %v349 = vadd.f32 %v338, %v345
        %v350 = vadd.f32 %v339, %v345
        %v351 = vadd.f32 %v340, %v345
        %v352 = vld [vmem:[#allocation2] sm:$0x1]
        %v353 = vsel %vm263, %v347, 0.0
        %v354 = vsel %vm263, %v348, 0.0
        %v355 = vadd.f32 %v353, %v354
        %v356 = vsel %vm263, %v349, 0.0
        %v357 = vadd.f32 %v355, %v356
        %v358 = vsel %vm263, %v350, 0.0
        %v359 = vadd.f32 %v357, %v358
        %v360 = vsel %vm263, %v351, 0.0
        %v361 = vadd.f32 %v359, %v360
        %v362 = vrot.slane %v361, 4
        %v363 = vadd.f32 %v361, %v362
        %v364 = vrot.slane %v363, 2
        %v365 = vadd.f32 %v363, %v364
        %v366 = vrot.slane %v365, 1
        %v367 = vadd.f32 %v365, %v366
        %v368 = vadd.f32 %v352, %v367
        %vm369 = vcmask 122880
        %370 = vst.msk [vmem:[#allocation2] sm:$0x1] %vm369, %v368
        // Predicated region
        $region45: #{tpu_custom_call.1} parent=39 // pred_check
          %p371 = pneg %p250
        $region46: #{tpu_custom_call.1} parent=39 // pred_check_branch
          %373 = sbr.rel (%p371) target = $region48
        $region47: #{tpu_custom_call.1} parent=39 // pred_region
          %v374 = vld [vmem:[#allocation2] sm:$0x1]
          %v375 = vmul.f32 %v374, 0.025
          %v376 = vld [vmem:[%s3] sm:$0xff]
          %v377 = vld [vmem:[%s3 + $0x8] sm:$0xff]
          %v378 = vld [vmem:[%s4] sm:$0x1]
          %v380 = vsel %vm263, %v375, 0
          %382 = vmatprep.subr.mxu0 0.0
          %383 = vmatpush1.msra.mxu0 %v376
          %384 = vmatprep.subr.mxu0 0.0
          %385 = vmatpush1.msra.mxu0 %v377
          %386 = vmatprep.subr.mxu0 0.0
          %387 = vmatpush1.msra.mxu0 0.0
          %388 = vmatprep.subr.mxu0 0.0
          %389 = vmatpush1.msra.mxu0 0.0
          %390 = vmatprep.subr.mxu0 0.0
          %391 = vmatpush1.msra.mxu0 0.0
          %392 = vmatprep.subr.mxu0 0.0
          %393 = vmatpush1.msra.mxu0 0.0
          %394 = vmatprep.subr.mxu0 0.0
          %395 = vmatpush1.msra.mxu0 0.0
          %396 = vmatprep.subr.mxu0 0.0
          %397 = vmatpush1.msra.mxu0 0.0
          %398 = vmatprep.subr.mxu0 0.0
          %399 = vmatpush1.msra.mxu0 0.0
          %400 = vmatprep.subr.mxu0 0.0
          %401 = vmatpush1.msra.mxu0 0.0
          %402 = vmatprep.subr.mxu0 0.0
          %403 = vmatpush1.msra.mxu0 0.0
          %404 = vmatprep.subr.mxu0 0.0
          %405 = vmatpush1.msra.mxu0 0.0
          %406 = vmatprep.subr.mxu0 0.0
          %407 = vmatpush1.msra.mxu0 0.0
          %408 = vmatprep.subr.mxu0 0.0
          %409 = vmatpush1.msra.mxu0 0.0
          %410 = vmatprep.subr.mxu0 0.0
          %411 = vmatpush1.msra.mxu0 0.0
          %412 = vmatprep.subr.mxu0 0.0
          %413 = vmatpush1.msra.mxu0 0.0
          %414 = vmatprep.subr.mxu0 0.0
          %415 = vmatpush1.msra.mxu0 0.0
          %416 = vmatprep.subr.mxu0 0.0
          %417 = vmatpush1.msra.mxu0 0.0
          %418 = vmatprep.subr.mxu0 0.0
          %419 = vmatpush1.msra.mxu0 0.0
          %420 = vmatprep.subr.mxu0 0.0
          %421 = vmatpush1.msra.mxu0 0.0
          %422 = vmatprep.subr.mxu0 0.0
          %423 = vmatpush1.msra.mxu0 0.0
          %424 = vmatprep.subr.mxu0 0.0
          %425 = vmatpush1.msra.mxu0 0.0
          %426 = vmatprep.subr.mxu0 0.0
          %427 = vmatpush1.msra.mxu0 0.0
          %428 = vmatprep.subr.mxu0 0.0
          %429 = vmatpush1.msra.mxu0 0.0
          %430 = vmatprep.subr.mxu0 0.0
          %431 = vmatpush1.msra.mxu0 0.0
          %432 = vmatprep.subr.mxu0 0.0
          %433 = vmatpush1.msra.mxu0 0.0
          %434 = vmatprep.subr.mxu0 0.0
          %435 = vmatpush1.msra.mxu0 0.0
          %436 = vmatprep.subr.mxu0 0.0
          %437 = vmatpush1.msra.mxu0 0.0
          %438 = vmatprep.subr.mxu0 0.0
          %439 = vmatpush1.msra.mxu0 0.0
          %440 = vmatprep.subr.mxu0 0.0
          %441 = vmatpush1.msra.mxu0 0.0
          %442 = vmatprep.subr.mxu0 0.0
          %443 = vmatpush1.msra.mxu0 0.0
          %444 = vmatprep.subr.mxu0 0.0
          %445 = vmatpush1.msra.mxu0 0.0
          %446 = vmatprep.mubr.f32.mxu0 0.0
          %447 = vmatmul.mubr.f32.gmra.mrb[0].mxu0 %v380
          %v448 = vpop.f32.mrb[0].mxu0
          %v449 = vadd.f32 %v378, %v448
          %v450 = vpop.f32.mrb[0].mxu0
          %451 = vdwg.mxu0
          %vm452 = vcmask 253952
          %453 = vst.msk [vmem:[%s239] sm:$0x1] %vm452, %v449
        $region48: #{tpu_custom_call.1} parent=39 // pred_fallthru
          _
        %s454 = sand.u32 %s151, 1
        %s455 = scalar_lea.sflag [#allocation4], %s454
        %s456 = sand.u32 %s151, 1
        %s457 = scalar_lea.vmem [#allocation3], %s456
        // Predicated region
        $region49: #{tpu_custom_call.1} parent=39 // pred_check
          %p458 = pneg %p161
        $region50: #{tpu_custom_call.1} parent=39 // pred_check_branch
          %460 = sbr.rel (%p458) target = $region52
        $region51: #{tpu_custom_call.1} parent=39 // pred_region
          %s462 = ssub.s32 16, 16
          %463 = vsyncadd %s455, %s462
          %s464 = smul.addr %s23, 16
          %s465 = scalar_lea.hbm %s5, %s464
          %s467 = sshll.u32 %s457, 4
          %s468 = int_to_ptr.vmem [resolvable:$true] %s467
          %470 = dma.vmem_to_hbm [thread:$0]  %s468, 16, %s465, %s455
        $region52: #{tpu_custom_call.1} parent=39 // pred_fallthru
          _
      $region40: #{tpu_custom_call.1} parent=5 // pred_fallthru
        _
      %p471 = scmp.le.s32.totalorder 2, %s14
      // Predicated region
      $region53: #{tpu_custom_call.1} parent=5 // pred_check
        %p472 = pneg %p471
      $region54: #{tpu_custom_call.1} parent=5 // pred_check_branch
        %474 = sbr.rel (%p472) target = $region56
      $region55: #{tpu_custom_call.1} parent=5 // pred_region
        %s475 = ssub.s32 %s14, 2
        // Predicated region
        $region57: #{tpu_custom_call.1} parent=55 // pred_check
          %p476 = pneg %p167
        $region58: #{tpu_custom_call.1} parent=55 // pred_check_branch
          %478 = sbr.rel (%p476) target = $region60
        $region59: #{tpu_custom_call.1} parent=55 // pred_region
          %s479 = sand.u32 %s152, 1
          %s480 = scalar_lea.sflag [#allocation4], %s479
          %s481 = sand.u32 %s152, 1
          %s482 = scalar_lea.vmem [#allocation3], %s481
          %483 = dma.done %s480, 16
        $region60: #{tpu_custom_call.1} parent=55 // pred_fallthru
          _
      $region56: #{tpu_custom_call.1} parent=5 // pred_fallthru
        _
    $region6: #{tpu_custom_call.1} parent=1 // loop_footer
      %s18 = sadd.s32 1, %s14
    $region7: #{tpu_custom_call.1} parent=1 // loop_footer_branch
      %13 = sbr.rel target = $region3
    $region8: #{tpu_custom_call.1} parent=1 // loop_exit
      _
    %484 = vsyncpa [#allocation4], 1
    %s485 = scalar_lea.sflag [#allocation4], 1
    %486 = vsyncpa %s485, 1

</llo_original>
